<compile_context>
chip_gen: v7x
topology: tpu7x:2x2x1
jax: 0.10.0
libtpu: 0.0.40
codegen_flags: <defaults>
</compile_context>

<pallas_src>
import functools

import jax
import jax.numpy as jnp
from jax import lax
from jax.experimental import pallas as pl
from jax.experimental.pallas import tpu as pltpu


def conv_bn_silu_kernel(x_ref, w_ref, scale_ref, shift_ref, o_ref, xpad_ref,
                        *, ksize, pad):
    # x_ref:     (1, H, W, Cin) bf16    full image, resident across the H-band loop
    # w_ref:     (KH*KW*Cin, Cout) bf16 im2col-ordered weights, resident
    # scale_ref: (1, Cout) f32          folded BN scale  (gamma / sqrt(var+eps))
    # shift_ref: (1, Cout) f32          folded BN shift  (beta - mean*scale)
    # o_ref:     (1, TH, W, Cout)       output row band
    # xpad_ref:  (Hp, Wp, Cin) f32 VMEM scratch: zero-padded copy of the image
    _, H, W, Cin = x_ref.shape
    _, TH, _, Cout = o_ref.shape
    h = pl.program_id(1)

    # Build the zero-padded image once per batch element (first band of each
    # batch); it persists in scratch across the nH band steps.  This replaces a
    # full jnp.pad HBM round trip in the wrapper.
    @pl.when(h == 0)
    def _():
        xpad_ref[...] = jnp.zeros_like(xpad_ref)
        xpad_ref[pad:pad + H, pad:pad + W, :] = x_ref[0].astype(xpad_ref.dtype)

    # Rows of the padded image feeding this output band: [h*TH, h*TH + TH + 2*pad).
    row0 = pl.multiple_of(h * TH, TH)
    band = xpad_ref[pl.ds(row0, TH + 2 * pad), :, :]          # (TH+2p, Wp, Cin) f32

    # In-kernel im2col: one (TH*W, KH*KW*Cin) block -> a single MXU matmul with
    # contraction K = KH*KW*Cin (instead of KH*KW matmuls with K = Cin).
    # (The kw shift could alternatively be a pltpu.roll along W; for 3x3 taps the
    # static slices below are equivalent at this size.)
    cols = []
    for i in range(ksize):            # kh tap
        for j in range(ksize):        # kw tap
            cols.append(band[i:i + TH, j:j + W, :])           # (TH, W, Cin)
    patches = jnp.concatenate(cols, axis=-1)                  # (TH, W, KH*KW*Cin)
    patches = patches.reshape(TH * W, ksize * ksize * Cin)

    acc = jnp.dot(patches.astype(jnp.bfloat16), w_ref[...],
                  preferred_element_type=jnp.float32)         # (TH*W, Cout) f32

    # Fused BatchNorm (eval mode) + SiLU, all in f32 (v5e-safe epilogue).
    y = acc * scale_ref[...] + shift_ref[...]
    y = y * pl.reciprocal(1.0 + jnp.exp(-y), approx=True)     # SiLU = y * sigmoid(y)

    o_ref[0] = y.reshape(TH, W, Cout).astype(o_ref.dtype)


@functools.partial(jax.jit, static_argnames=("k", "eps", "band_rows"))
def conv_bn_silu(x_nchw, weight_oihw, gamma, beta, run_mean, run_var,
                 *, k=3, eps=1e-5, band_rows=8):
    """Conv(c1, c2, k, s=1) forward: act(bn(conv(x))). NCHW in / NCHW out."""
    B, C1, H, W = x_nchw.shape
    C2 = weight_oihw.shape[0]
    pad = k // 2                       # autopad for dilation 1
    TH = band_rows
    assert H % TH == 0, "H must be divisible by the row-band size"
    Hp, Wp = H + 2 * pad, W + 2 * pad
    nH = H // TH

    # Layout glue (plain JAX): NCHW -> NHWC, bf16 activations for DMA + MXU.
    # TODO(synk): emit the consumer's layout directly from the kernel to drop the
    # two wrapper transposes (kept because the spec is NCHW-in / NCHW-out).
    x_nhwc = jnp.transpose(x_nchw, (0, 2, 3, 1)).astype(jnp.bfloat16)

    # Weights: OIHW -> HWIO -> (KH*KW*Cin, Cout) im2col matrix, bf16.
    # Row index order is (kh*KW + kw)*Cin + ci, matching the in-kernel patch build.
    w2 = jnp.transpose(weight_oihw, (2, 3, 1, 0)).astype(jnp.bfloat16)
    w2 = w2.reshape(k * k * C1, C2)

    # Fold BatchNorm (eval mode) into a per-channel affine, f32.
    scale = gamma / jnp.sqrt(run_var + eps)
    shift = beta - run_mean * scale
    scale2d = scale.reshape(1, C2).astype(jnp.float32)
    shift2d = shift.reshape(1, C2).astype(jnp.float32)

    kernel = functools.partial(conv_bn_silu_kernel, ksize=k, pad=pad)

    out_nhwc = pl.pallas_call(
        kernel,
        out_shape=jax.ShapeDtypeStruct((B, H, W, C2), jnp.float32),
        grid_spec=pltpu.PrefetchScalarGridSpec(
            num_scalar_prefetch=0,
            grid=(B, nH),
            in_specs=[
                # Full image per batch element, resident across the nH band steps
                # (same block index for every h -> fetched once per batch).
                pl.BlockSpec((1, H, W, C1), lambda b, h: (b, 0, 0, 0)),
                pl.BlockSpec((k * k * C1, C2), lambda b, h: (0, 0)),
                pl.BlockSpec((1, C2), lambda b, h: (0, 0)),
                pl.BlockSpec((1, C2), lambda b, h: (0, 0)),
            ],
            # Row-band output tiles.  Lane dim is Cout: for production channel
            # counts pad Cout to a multiple of 128 for fully unmasked stores.
            out_specs=pl.BlockSpec((1, TH, W, C2), lambda b, h: (b, h, 0, 0)),
            scratch_shapes=[pltpu.VMEM((Hp, Wp, C1), jnp.float32)],
        ),
        compiler_params=pltpu.CompilerParams(
            dimension_semantics=("parallel", "arbitrary"),
            vmem_limit_bytes=48 * 1024 * 1024,   # stays inside v7x's 64 MiB VMEM
        ),
    )(x_nhwc, w2, scale2d, shift2d)

    return jnp.transpose(out_nhwc, (0, 3, 1, 2))  # back to NCHW


def reference(x_nchw, weight_oihw, gamma, beta, run_mean, run_var,
              *, k=3, eps=1e-5):
    pad = k // 2
    y = lax.conv_general_dilated(
        x_nchw.astype(jnp.float32), weight_oihw.astype(jnp.float32),
        window_strides=(1, 1), padding=((pad, pad), (pad, pad)),
        dimension_numbers=("NCHW", "OIHW", "NCHW"))
    scale = gamma / jnp.sqrt(run_var + eps)
    shift = beta - run_mean * scale
    y = y * scale[None, :, None, None] + shift[None, :, None, None]
    return y * jax.nn.sigmoid(y)


if __name__ == "__main__":
    key = jax.random.PRNGKey(0)
    B, C1, C2, H, W, K = 2, 4, 8, 16, 16, 3

    k_x, k_w, k_g, k_b, k_m, k_v = jax.random.split(key, 6)
    x = jax.random.normal(k_x, (B, C1, H, W), dtype=jnp.float32)
    weight = jax.random.normal(k_w, (C2, C1, K, K), dtype=jnp.float32) * 0.1
    gamma = 1.0 + 0.1 * jax.random.normal(k_g, (C2,), dtype=jnp.float32)
    beta = 0.1 * jax.random.normal(k_b, (C2,), dtype=jnp.float32)
    run_mean = 0.1 * jax.random.normal(k_m, (C2,), dtype=jnp.float32)
    run_var = jnp.abs(1.0 + 0.1 * jax.random.normal(k_v, (C2,), dtype=jnp.float32))

    out = conv_bn_silu(x, weight, gamma, beta, run_mean, run_var, k=K, band_rows=8)
    out = jax.block_until_ready(out)

    ref = reference(x, weight, gamma, beta, run_mean, run_var, k=K)
    assert out.shape == (B, C2, H, W)
    max_err = float(jnp.max(jnp.abs(out - ref)))
    # bf16 matmul inputs + approx-reciprocal sigmoid -> relaxed tolerance.
    assert max_err < 5e-2, f"mismatch vs reference (max abs err {max_err})"

    print("KERNEL_OK")
</pallas_src>

<mosaic_0001>
module attributes {stable_mosaic.version = 11 : i64} {
  func.func @conv_bn_silu_kernel(%arg0: i32, %arg1: i32, %arg2: memref<1x16x16x4xbf16, #tpu.memory_space<vmem>>, %arg3: memref<36x8xbf16, #tpu.memory_space<vmem>>, %arg4: memref<1x8xf32, #tpu.memory_space<vmem>>, %arg5: memref<1x8xf32, #tpu.memory_space<vmem>>, %arg6: memref<1x8x16x8xf32, #tpu.memory_space<vmem>>, %arg7: memref<18x18x4xf32, #tpu.memory_space<vmem>>) attributes {dimension_semantics = [#tpu.dimension_semantics<parallel>, #tpu.dimension_semantics<arbitrary>], iteration_bounds = array<i64: 2, 2>, scalar_prefetch = 0 : i64, scratch_operands = 1 : i64, tpu.core_type = #tpu.core_type<tc>, window_params = [{transform_indices = @transform_0, window_bounds = array<i64: 1, 16, 16, 4>}, {pipeline_mode = #tpu.pipeline_mode<synchronous>, transform_indices = @transform_1, window_bounds = array<i64: 36, 8>}, {pipeline_mode = #tpu.pipeline_mode<synchronous>, transform_indices = @transform_2, window_bounds = array<i64: 1, 8>}, {pipeline_mode = #tpu.pipeline_mode<synchronous>, transform_indices = @transform_3, window_bounds = array<i64: 1, 8>}, {transform_indices = @transform_4, window_bounds = array<i64: 1, 8, 16, 8>}]} {
    %c0_i32 = arith.constant 0 : i32
    %0 = arith.cmpi eq, %arg1, %c0_i32 : i32
    %1 = arith.extui %0 : i1 to i32
    %c0_i32_0 = arith.constant 0 : i32
    %2 = arith.cmpi ne, %1, %c0_i32_0 : i32
    scf.if %2 {
      %cst_14 = arith.constant 0.000000e+00 : f32
      %38 = vector.broadcast %cst_14 : f32 to vector<18x18x4xf32>
      %c0_15 = arith.constant 0 : index
      %c0_16 = arith.constant 0 : index
      %c0_17 = arith.constant 0 : index
      %39 = vector.load %arg7[%c0_15, %c0_16, %c0_17] : memref<18x18x4xf32, #tpu.memory_space<vmem>>, vector<18x18x4xf32>
      tpu.vector_store %arg7[%c0_15, %c0_16, %c0_17], %38 {strides = array<i32>} : memref<18x18x4xf32, #tpu.memory_space<vmem>>, vector<18x18x4xf32>,
      %c0_18 = arith.constant 0 : index
      %c0_19 = arith.constant 0 : index
      %c0_20 = arith.constant 0 : index
      %c0_21 = arith.constant 0 : index
      %40 = vector.load %arg2[%c0_18, %c0_19, %c0_20, %c0_21] : memref<1x16x16x4xbf16, #tpu.memory_space<vmem>>, vector<1x16x16x4xbf16>
      %41 = vector.shape_cast %40 : vector<1x16x16x4xbf16> to vector<16x16x4xbf16>
      %42 = arith.extf %41 : vector<16x16x4xbf16> to vector<16x16x4xf32>
      %c1 = arith.constant 1 : index
      %c1_22 = arith.constant 1 : index
      %c0_23 = arith.constant 0 : index
      %43 = vector.load %arg7[%c1, %c1_22, %c0_23] : memref<18x18x4xf32, #tpu.memory_space<vmem>>, vector<16x16x4xf32>
      tpu.vector_store %arg7[%c1, %c1_22, %c0_23], %42 {strides = array<i32>} : memref<18x18x4xf32, #tpu.memory_space<vmem>>, vector<16x16x4xf32>,
    } else {
    }
    %c8_i32 = arith.constant 8 : i32
    %3 = arith.muli %arg1, %c8_i32 : i32
    %4 = tpu.assume_multiple %3, 8 : i32
    %5 = arith.index_cast %4 : i32 to index
    %c0 = arith.constant 0 : index
    %c0_1 = arith.constant 0 : index
    %6 = vector.load %arg7[%5, %c0, %c0_1] : memref<18x18x4xf32, #tpu.memory_space<vmem>>, vector<10x18x4xf32>
    %7 = vector.extract_strided_slice %6 {offsets = [0, 0, 0], sizes = [8, 16, 4], strides = [1, 1, 1]} : vector<10x18x4xf32> to vector<8x16x4xf32>
    %8 = vector.extract_strided_slice %6 {offsets = [0, 1, 0], sizes = [8, 16, 4], strides = [1, 1, 1]} : vector<10x18x4xf32> to vector<8x16x4xf32>
    %9 = vector.extract_strided_slice %6 {offsets = [0, 2, 0], sizes = [8, 16, 4], strides = [1, 1, 1]} : vector<10x18x4xf32> to vector<8x16x4xf32>
    %10 = vector.extract_strided_slice %6 {offsets = [1, 0, 0], sizes = [8, 16, 4], strides = [1, 1, 1]} : vector<10x18x4xf32> to vector<8x16x4xf32>
    %11 = vector.extract_strided_slice %6 {offsets = [1, 1, 0], sizes = [8, 16, 4], strides = [1, 1, 1]} : vector<10x18x4xf32> to vector<8x16x4xf32>
    %12 = vector.extract_strided_slice %6 {offsets = [1, 2, 0], sizes = [8, 16, 4], strides = [1, 1, 1]} : vector<10x18x4xf32> to vector<8x16x4xf32>
    %13 = vector.extract_strided_slice %6 {offsets = [2, 0, 0], sizes = [8, 16, 4], strides = [1, 1, 1]} : vector<10x18x4xf32> to vector<8x16x4xf32>
    %14 = vector.extract_strided_slice %6 {offsets = [2, 1, 0], sizes = [8, 16, 4], strides = [1, 1, 1]} : vector<10x18x4xf32> to vector<8x16x4xf32>
    %15 = vector.extract_strided_slice %6 {offsets = [2, 2, 0], sizes = [8, 16, 4], strides = [1, 1, 1]} : vector<10x18x4xf32> to vector<8x16x4xf32>
    %16 = tpu.concatenate %7, %8, %9, %10, %11, %12, %13, %14, %15 in 2 : vector<8x16x4xf32>, vector<8x16x4xf32>, vector<8x16x4xf32>, vector<8x16x4xf32>, vector<8x16x4xf32>, vector<8x16x4xf32>, vector<8x16x4xf32>, vector<8x16x4xf32>, vector<8x16x4xf32> -> vector<8x16x36xf32>
    %17 = vector.shape_cast %16 : vector<8x16x36xf32> to vector<128x36xf32>
    %18 = arith.truncf %17 : vector<128x36xf32> to vector<128x36xbf16>
    %c0_2 = arith.constant 0 : index
    %c0_3 = arith.constant 0 : index
    %19 = vector.load %arg3[%c0_2, %c0_3] : memref<36x8xbf16, #tpu.memory_space<vmem>>, vector<36x8xbf16>
    %cst = arith.constant dense<0.000000e+00> : vector<128x8xf32>
    %20 = tpu.matmul %18, %19, %cst {dimension_numbers = #tpu.dot_dimension_numbers<[1], [0], [0], [1], [0, 0, 1, 1], [], []>} : vector<128x36xbf16>, vector<36x8xbf16>, vector<128x8xf32> -> vector<128x8xf32>
    %c0_4 = arith.constant 0 : index
    %c0_5 = arith.constant 0 : index
    %21 = vector.load %arg4[%c0_4, %c0_5] : memref<1x8xf32, #tpu.memory_space<vmem>>, vector<1x8xf32>
    %22 = vector.broadcast %21 : vector<1x8xf32> to vector<128x8xf32>
    %23 = arith.mulf %20, %22 : vector<128x8xf32>
    %c0_6 = arith.constant 0 : index
    %c0_7 = arith.constant 0 : index
    %24 = vector.load %arg5[%c0_6, %c0_7] : memref<1x8xf32, #tpu.memory_space<vmem>>, vector<1x8xf32>
    %25 = vector.broadcast %24 : vector<1x8xf32> to vector<128x8xf32>
    %26 = arith.addf %23, %25 : vector<128x8xf32>
    %cst_8 = arith.constant 0.000000e+00 : f32
    %27 = vector.broadcast %cst_8 : f32 to vector<128x8xf32>
    %28 = arith.subf %27, %26 : vector<128x8xf32>
    %29 = math.exp %28 : vector<128x8xf32>
    %cst_9 = arith.constant 1.000000e+00 : f32
    %30 = vector.broadcast %cst_9 : f32 to vector<128x8xf32>
    %31 = arith.addf %30, %29 : vector<128x8xf32>
    %32 = tpu.reciprocal %31 {approx = true} : vector<128x8xf32> -> vector<128x8xf32>
    %33 = arith.mulf %26, %32 : vector<128x8xf32>
    %34 = vector.shape_cast %33 : vector<128x8xf32> to vector<8x16x8xf32>
    %c0_10 = arith.constant 0 : index
    %c0_11 = arith.constant 0 : index
    %c0_12 = arith.constant 0 : index
    %c0_13 = arith.constant 0 : index
    %35 = vector.load %arg6[%c0_10, %c0_11, %c0_12, %c0_13] : memref<1x8x16x8xf32, #tpu.memory_space<vmem>>, vector<1x8x16x8xf32>
    %36 = vector.shape_cast %35 : vector<1x8x16x8xf32> to vector<8x16x8xf32>
    %37 = vector.shape_cast %34 : vector<8x16x8xf32> to vector<1x8x16x8xf32>
    tpu.vector_store %arg6[%c0_10, %c0_11, %c0_12, %c0_13], %37 {strides = array<i32>} : memref<1x8x16x8xf32, #tpu.memory_space<vmem>>, vector<1x8x16x8xf32>,
    return
  }
  func.func @transform_0(%arg0: i32, %arg1: i32) -> (i32, i32, i32, i32) {
    %c0_i32 = arith.constant 0 : i32
    %c0_i32_0 = arith.constant 0 : i32
    %c0_i32_1 = arith.constant 0 : i32
    %c0_i32_2 = arith.constant 0 : i32
    return %arg0, %c0_i32, %c0_i32_0, %c0_i32_1 : i32, i32, i32, i32
  }
  func.func @transform_1(%arg0: i32, %arg1: i32) -> (i32, i32) {
    %c0_i32 = arith.constant 0 : i32
    %c0_i32_0 = arith.constant 0 : i32
    %c0_i32_1 = arith.constant 0 : i32
    return %c0_i32, %c0_i32_0 : i32, i32
  }
  func.func @transform_2(%arg0: i32, %arg1: i32) -> (i32, i32) {
    %c0_i32 = arith.constant 0 : i32
    %c0_i32_0 = arith.constant 0 : i32
    %c0_i32_1 = arith.constant 0 : i32
    return %c0_i32, %c0_i32_0 : i32, i32
  }
  func.func @transform_3(%arg0: i32, %arg1: i32) -> (i32, i32) {
    %c0_i32 = arith.constant 0 : i32
    %c0_i32_0 = arith.constant 0 : i32
    %c0_i32_1 = arith.constant 0 : i32
    return %c0_i32, %c0_i32_0 : i32, i32
  }
  func.func @transform_4(%arg0: i32, %arg1: i32) -> (i32, i32, i32, i32) {
    %c0_i32 = arith.constant 0 : i32
    %c0_i32_0 = arith.constant 0 : i32
    %c0_i32_1 = arith.constant 0 : i32
    return %arg0, %arg1, %c0_i32, %c0_i32_0 : i32, i32, i32, i32
  }
}

</mosaic_0001>

<llo_original>
// kernel: conv_bn_silu.1
$region0: #{conv_bn_silu.1}
  #allocation0 [shape = 'u32[]', space=smem, size = 0x4, offset = 0x4, fixed_abs, tag = 'smem constant byte address 0x4 - core index']
  #allocation1 [shape = 'u32[144,128]{1,0:T(1,128)}', space=vmem, size = 0x12000, scoped, tag = 'internal scratch']
  #allocation2 [shape = 'f32[18,18,4]{2,1,0:T(8,128)}', space=vmem, size = 0x36000, scoped, tag = 'scratch operand']
  %s0 = inlined_call_operand.vmem [shape: bf16[2,16,16,4], index: 0, kind: input, shape index: {}]
  %s1 = inlined_call_operand.vmem [shape: bf16[36,8], index: 1, kind: input, shape index: {}]
  %s2 = inlined_call_operand.vmem [shape: f32[1,8], index: 2, kind: input, shape index: {}]
  %s3 = inlined_call_operand.vmem [shape: f32[1,8], index: 3, kind: input, shape index: {}]
  %s4 = inlined_call_operand.vmem [shape: f32[2,16,16,8], index: 4, kind: output, shape index: {}]
  %s5 = sld [smem:[#allocation0]]
  $region53: #{conv_bn_silu.1} parent=0
    _
  %s7 = ssub.s32 1, %s5
  %s8 = scalar_select 0, %s7, %s5
  loop: start=0, step=1, limit=6
  $region2: #{conv_bn_silu.1} parent=0 // loop_pre_header
    _
  $region3: #{conv_bn_silu.1} parent=0 // loop_header
    %s10 = sphi 0, %s14
    %p11 = scmp.ge.s32.totalorder %s10, 6
    %s17 = sphi 0, %s29
    %s18 = sphi 0, %s25
    %s19 = sphi 0, %s17
    %s20 = sphi 0, %s18
    %s21 = sphi 0, %s19
    %s22 = sphi 0, %s20
    %s32 = sphi 0, %s34
    %s35 = sphi 0, %s32
    %s36 = sphi 0, %s35
    %s52 = sphi 0, %s36
    %s56 = sphi 0, %s56
    %s58 = sphi 0, %s56
    %s59 = sphi 0, %s58
    %s73 = sphi 0, %s59
    %s77 = sphi 0, %s77
    %s79 = sphi 0, %s77
    %s80 = sphi 0, %s79
    %s94 = sphi 0, %s80
    %s98 = sphi 0, %s98
    %s100 = sphi 0, %s98
    %s101 = sphi 0, %s100
    %s115 = sphi 0, %s101
    %s123 = sphi 0, %s125
    %s126 = sphi 0, %s123
    %s127 = sphi 0, %s126
    %s143 = sphi 0, %s127
  $region4: #{conv_bn_silu.1} parent=0 // loop_header_branch
    %13 = sbr.rel (%p11) target = $region8
  $region5: #{conv_bn_silu.1} parent=0 // loop_body
    %s15 = ssub.s32 %s10, 1
    %s16 = ssub.s32 %s10, 2
    %s23 = sadd.s32 1, %s18
    %p24 = scmp.ge.s32.totalorder %s23, 2
    %s25 = scalar_select %p24, 0, %s23
    %s26 = sadd.s32 1, %s17
    %s27 = scalar_select %p24, %s26, %s17
    %p28 = scmp.ge.s32.totalorder %s27, 2
    %s29 = scalar_select %p28, 0, %s27
    %s30 = ssub.s32 %s17, %s29
    %p31 = scmp.eq.s32.totalorder %s30, 0
    %s33 = sadd.s32 %s32, 1
    %s34 = scalar_select %p31, %s32, %s33
    %p37 = pneg %p31
    %p38 = scmp.eq.s32.totalorder %s10, 3
    %p39 = por %p37, %p38
    %p40 = scmp.ne.s32.totalorder %s32, %s35
    %p41 = scmp.eq.s32.totalorder %s10, 0
    %p42 = por %p40, %p41
    %p43 = scmp.ne.s32.totalorder %s32, %s35
    %p44 = scmp.eq.s32.totalorder %s15, 3
    %p45 = por %p43, %p44
    %p46 = scmp.ne.s32.totalorder %s35, %s36
    %p47 = scmp.eq.s32.totalorder %s15, 0
    %p48 = por %p46, %p47
    %p49 = scmp.ne.s32.totalorder %s35, %s36
    %p50 = scmp.eq.s32.totalorder %s16, 3
    %p51 = por %p49, %p50
    %p53 = scmp.ne.s32.totalorder %s36, %s52
    %p54 = scmp.eq.s32.totalorder %s16, 0
    %p55 = por %p53, %p54
    %s57 = sadd.s32 %s56, 1
    %p60 = scmp.eq.s32.totalorder %s10, 3
    %p61 = scmp.ne.s32.totalorder %s56, %s58
    %p62 = scmp.eq.s32.totalorder %s10, 0
    %p63 = por %p61, %p62
    %p64 = scmp.ne.s32.totalorder %s56, %s58
    %p65 = scmp.eq.s32.totalorder %s15, 3
    %p66 = por %p64, %p65
    %p67 = scmp.ne.s32.totalorder %s58, %s59
    %p68 = scmp.eq.s32.totalorder %s15, 0
    %p69 = por %p67, %p68
    %p70 = scmp.ne.s32.totalorder %s58, %s59
    %p71 = scmp.eq.s32.totalorder %s16, 3
    %p72 = por %p70, %p71
    %p74 = scmp.ne.s32.totalorder %s59, %s73
    %p75 = scmp.eq.s32.totalorder %s16, 0
    %p76 = por %p74, %p75
    %s78 = sadd.s32 %s77, 1
    %p81 = scmp.eq.s32.totalorder %s10, 3
    %p82 = scmp.ne.s32.totalorder %s77, %s79
    %p83 = scmp.eq.s32.totalorder %s10, 0
    %p84 = por %p82, %p83
    %p85 = scmp.ne.s32.totalorder %s77, %s79
    %p86 = scmp.eq.s32.totalorder %s15, 3
    %p87 = por %p85, %p86
    %p88 = scmp.ne.s32.totalorder %s79, %s80
    %p89 = scmp.eq.s32.totalorder %s15, 0
    %p90 = por %p88, %p89
    %p91 = scmp.ne.s32.totalorder %s79, %s80
    %p92 = scmp.eq.s32.totalorder %s16, 3
    %p93 = por %p91, %p92
    %p95 = scmp.ne.s32.totalorder %s80, %s94
    %p96 = scmp.eq.s32.totalorder %s16, 0
    %p97 = por %p95, %p96
    %s99 = sadd.s32 %s98, 1
    %p102 = scmp.eq.s32.totalorder %s10, 3
    %p103 = scmp.ne.s32.totalorder %s98, %s100
    %p104 = scmp.eq.s32.totalorder %s10, 0
    %p105 = por %p103, %p104
    %p106 = scmp.ne.s32.totalorder %s98, %s100
    %p107 = scmp.eq.s32.totalorder %s15, 3
    %p108 = por %p106, %p107
    %p109 = scmp.ne.s32.totalorder %s100, %s101
    %p110 = scmp.eq.s32.totalorder %s15, 0
    %p111 = por %p109, %p110
    %p112 = scmp.ne.s32.totalorder %s100, %s101
    %p113 = scmp.eq.s32.totalorder %s16, 3
    %p114 = por %p112, %p113
    %p116 = scmp.ne.s32.totalorder %s101, %s115
    %p117 = scmp.eq.s32.totalorder %s16, 0
    %p118 = por %p116, %p117
    %s119 = ssub.s32 %s17, %s29
    %s120 = ssub.s32 %s18, %s25
    %s121 = sor.u32 %s119, %s120
    %p122 = scmp.eq.s32.totalorder %s121, 0
    %s124 = sadd.s32 %s123, 1
    %s125 = scalar_select %p122, %s123, %s124
    %p128 = pneg %p122
    %p129 = scmp.eq.s32.totalorder %s10, 3
    %p130 = por %p128, %p129
    %p131 = scmp.ne.s32.totalorder %s123, %s126
    %p132 = scmp.eq.s32.totalorder %s10, 0
    %p133 = por %p131, %p132
    %p134 = scmp.ne.s32.totalorder %s123, %s126
    %p135 = scmp.eq.s32.totalorder %s15, 3
    %p136 = por %p134, %p135
    %p137 = scmp.ne.s32.totalorder %s126, %s127
    %p138 = scmp.eq.s32.totalorder %s15, 0
    %p139 = por %p137, %p138
    %p140 = scmp.ne.s32.totalorder %s126, %s127
    %p141 = scmp.eq.s32.totalorder %s16, 3
    %p142 = por %p140, %p141
    %p144 = scmp.ne.s32.totalorder %s127, %s143
    %p145 = scmp.eq.s32.totalorder %s16, 0
    %p146 = por %p144, %p145
    %p147 = scmp.le.s32.totalorder 1, %s10
    %p148 = scmp.lt.s32.totalorder %s10, 5
    %p149 = pnand %p147, %p148
    %p150 = pneg %p149
    // Predicated region
    $region9: #{conv_bn_silu.1} parent=5 // pred_check
      _
    $region10: #{conv_bn_silu.1} parent=5 // pred_check_branch
      %152 = sbr.rel (%p149) target = $region12
    $region11: #{conv_bn_silu.1} parent=5 // pred_region
      %s153 = ssub.s32 %s10, 1
      // Predicated region
      $region13: #{conv_bn_silu.1} parent=11 // pred_check
        %p154 = pneg %p69
      $region14: #{conv_bn_silu.1} parent=11 // pred_check_branch
        %156 = sbr.rel (%p154) target = $region16
      $region15: #{conv_bn_silu.1} parent=11 // pred_region
        _
      $region16: #{conv_bn_silu.1} parent=11 // pred_fallthru
        _
      // Predicated region
      $region17: #{conv_bn_silu.1} parent=11 // pred_check
        %p157 = pneg %p90
      $region18: #{conv_bn_silu.1} parent=11 // pred_check_branch
        %159 = sbr.rel (%p157) target = $region20
      $region19: #{conv_bn_silu.1} parent=11 // pred_region
        _
      $region20: #{conv_bn_silu.1} parent=11 // pred_fallthru
        _
      // Predicated region
      $region21: #{conv_bn_silu.1} parent=11 // pred_check
        %p160 = pneg %p111
      $region22: #{conv_bn_silu.1} parent=11 // pred_check_branch
        %162 = sbr.rel (%p160) target = $region24
      $region23: #{conv_bn_silu.1} parent=11 // pred_region
        _
      $region24: #{conv_bn_silu.1} parent=11 // pred_fallthru
        _
    $region12: #{conv_bn_silu.1} parent=5 // pred_fallthru
      _
    %p163 = scmp.lt.s32.totalorder %s10, 4
    // Predicated region
    $region25: #{conv_bn_silu.1} parent=5 // pred_check
      %p164 = pneg %p163
    $region26: #{conv_bn_silu.1} parent=5 // pred_check_branch
      %166 = sbr.rel (%p164) target = $region28
    $region27: #{conv_bn_silu.1} parent=5 // pred_region
      // Predicated region
      $region29: #{conv_bn_silu.1} parent=27 // pred_check
        %p167 = pneg %p42
      $region30: #{conv_bn_silu.1} parent=27 // pred_check_branch
        %169 = sbr.rel (%p167) target = $region32
      $region31: #{conv_bn_silu.1} parent=27 // pred_region
        %p170 = scmp.lt.s32.totalorder %s17, 1
        %s171 = scalar_select %p170, %s17, 1
        %s172 = smul.addr %s171, 32
        %s173 = smul.addr %s172, 4
        %s174 = scalar_lea.vmem %s0, %s173
      $region32: #{conv_bn_silu.1} parent=27 // pred_fallthru
        _
    $region28: #{conv_bn_silu.1} parent=5 // pred_fallthru
      _
    %p175 = scmp.le.s32.totalorder 1, %s10
    %p176 = scmp.lt.s32.totalorder %s10, 5
    %p177 = pnand %p175, %p176
    %p178 = pneg %p177
    // Predicated region
    $region33: #{conv_bn_silu.1} parent=5 // pred_check
      _
    $region34: #{conv_bn_silu.1} parent=5 // pred_check_branch
      %180 = sbr.rel (%p177) target = $region36
    $region35: #{conv_bn_silu.1} parent=5 // pred_region
      %s181 = ssub.s32 %s10, 1
      %p182 = scmp.lt.s32.totalorder %s19, 1
      %s183 = scalar_select %p182, %s19, 1
      %s184 = smul.addr %s183, 32
      %s185 = smul.addr %s184, 4
      %s186 = scalar_lea.vmem %s0, %s185
      %p187 = pneg %p48
      %p188 = pneg %p45
      %p189 = pneg %p69
      %p190 = pneg %p66
      %p191 = pneg %p90
      %p192 = pneg %p87
      %p193 = pneg %p111
      %p194 = pneg %p108
      %p195 = pneg %p139
      %p196 = pneg %p136
      %s197 = smul.u32 8, %s20
      %p198 = scmp.lt.s32.totalorder %s19, 1
      %s199 = scalar_select %p198, %s19, 1
      %p200 = scmp.lt.s32.totalorder %s197, 15
      %s201 = scalar_select %p200, %s197, 15
      %s202 = smul.addr %s201, 2
      %s203 = smul.addr %s199, 32
      %s204 = sadd.s32 %s202, %s203
      %s205 = smul.addr %s204, 8
      %s206 = scalar_lea.vmem %s4, %s205
      %p207 = scmp.lt.s32.totalorder %s19, 1
      %s208 = scalar_select %p207, %s19, 1
      %s209 = smul.addr %s208, 32
      %s210 = smul.addr %s209, 4
      %s211 = scalar_lea.vmem %s0, %s210
      %s212 = smul.u32 8, %s20
      %p213 = scmp.lt.s32.totalorder %s19, 1
      %s214 = scalar_select %p213, %s19, 1
      %p215 = scmp.lt.s32.totalorder %s212, 15
      %s216 = scalar_select %p215, %s212, 15
      %s217 = smul.addr %s216, 2
      %s218 = smul.addr %s214, 32
      %s219 = sadd.s32 %s217, %s218
      %s220 = smul.addr %s219, 8
      %s221 = scalar_lea.vmem %s4, %s220
      %s222 = smul.u32 8, %s20
      %p224 = scmp.eq.s32.totalorder %s20, 0
      // Predicated region
      $region37: #{conv_bn_silu.1} parent=35 // pred_check
        %p225 = pneg %p224
      $region38: #{conv_bn_silu.1} parent=35 // pred_check_branch
        %227 = sbr.rel (%p225) target = $region40
      $region39: #{conv_bn_silu.1} parent=35 // pred_region
        %vm228 = vcmask 31744
        %229 = vst.msk [vmem:[#allocation2] sm:$0xff] %vm228, 0.0
        %230 = vst.msk [vmem:[#allocation2 + $0x8] sm:$0xff] %vm228, 0.0
        %vm231 = vcmask 25600
        %232 = vst.msk [vmem:[#allocation2 + $0x10] sm:$0x3] %vm231, 0.0
        %233 = vst.msk [vmem:[#allocation2 + $0x18] sm:$0xff] %vm228, 0.0
        %234 = vst.msk [vmem:[#allocation2 + $0x20] sm:$0xff] %vm228, 0.0
        %235 = vst.msk [vmem:[#allocation2 + $0x28] sm:$0x3] %vm231, 0.0
        %236 = vst.msk [vmem:[#allocation2 + $0x30] sm:$0xff] %vm228, 0.0
        %237 = vst.msk [vmem:[#allocation2 + $0x38] sm:$0xff] %vm228, 0.0
        %238 = vst.msk [vmem:[#allocation2 + $0x40] sm:$0x3] %vm231, 0.0
        %239 = vst.msk [vmem:[#allocation2 + $0x48] sm:$0xff] %vm228, 0.0
        %240 = vst.msk [vmem:[#allocation2 + $0x50] sm:$0xff] %vm228, 0.0
        %241 = vst.msk [vmem:[#allocation2 + $0x58] sm:$0x3] %vm231, 0.0
        %242 = vst.msk [vmem:[#allocation2 + $0x60] sm:$0xff] %vm228, 0.0
        %243 = vst.msk [vmem:[#allocation2 + $0x68] sm:$0xff] %vm228, 0.0
        %244 = vst.msk [vmem:[#allocation2 + $0x70] sm:$0x3] %vm231, 0.0
        %245 = vst.msk [vmem:[#allocation2 + $0x78] sm:$0xff] %vm228, 0.0
        %246 = vst.msk [vmem:[#allocation2 + $0x80] sm:$0xff] %vm228, 0.0
        %247 = vst.msk [vmem:[#allocation2 + $0x88] sm:$0x3] %vm231, 0.0
        %248 = vst.msk [vmem:[#allocation2 + $0x90] sm:$0xff] %vm228, 0.0
        %249 = vst.msk [vmem:[#allocation2 + $0x98] sm:$0xff] %vm228, 0.0
        %250 = vst.msk [vmem:[#allocation2 + $0xa0] sm:$0x3] %vm231, 0.0
        %251 = vst.msk [vmem:[#allocation2 + $0xa8] sm:$0xff] %vm228, 0.0
        %252 = vst.msk [vmem:[#allocation2 + $0xb0] sm:$0xff] %vm228, 0.0
        %253 = vst.msk [vmem:[#allocation2 + $0xb8] sm:$0x3] %vm231, 0.0
        %254 = vst.msk [vmem:[#allocation2 + $0xc0] sm:$0xff] %vm228, 0.0
        %255 = vst.msk [vmem:[#allocation2 + $0xc8] sm:$0xff] %vm228, 0.0
        %256 = vst.msk [vmem:[#allocation2 + $0xd0] sm:$0x3] %vm231, 0.0
        %257 = vst.msk [vmem:[#allocation2 + $0xd8] sm:$0xff] %vm228, 0.0
        %258 = vst.msk [vmem:[#allocation2 + $0xe0] sm:$0xff] %vm228, 0.0
        %259 = vst.msk [vmem:[#allocation2 + $0xe8] sm:$0x3] %vm231, 0.0
        %260 = vst.msk [vmem:[#allocation2 + $0xf0] sm:$0xff] %vm228, 0.0
        %261 = vst.msk [vmem:[#allocation2 + $0xf8] sm:$0xff] %vm228, 0.0
        %262 = vst.msk [vmem:[#allocation2 + $0x100] sm:$0x3] %vm231, 0.0
        %263 = vst.msk [vmem:[#allocation2 + $0x108] sm:$0xff] %vm228, 0.0
        %264 = vst.msk [vmem:[#allocation2 + $0x110] sm:$0xff] %vm228, 0.0
        %265 = vst.msk [vmem:[#allocation2 + $0x118] sm:$0x3] %vm231, 0.0
        %266 = vst.msk [vmem:[#allocation2 + $0x120] sm:$0xff] %vm228, 0.0
        %267 = vst.msk [vmem:[#allocation2 + $0x128] sm:$0xff] %vm228, 0.0
        %268 = vst.msk [vmem:[#allocation2 + $0x130] sm:$0x3] %vm231, 0.0
        %269 = vst.msk [vmem:[#allocation2 + $0x138] sm:$0xff] %vm228, 0.0
        %270 = vst.msk [vmem:[#allocation2 + $0x140] sm:$0xff] %vm228, 0.0
        %271 = vst.msk [vmem:[#allocation2 + $0x148] sm:$0x3] %vm231, 0.0
        %272 = vst.msk [vmem:[#allocation2 + $0x150] sm:$0xff] %vm228, 0.0
        %273 = vst.msk [vmem:[#allocation2 + $0x158] sm:$0xff] %vm228, 0.0
        %274 = vst.msk [vmem:[#allocation2 + $0x160] sm:$0x3] %vm231, 0.0
        %275 = vst.msk [vmem:[#allocation2 + $0x168] sm:$0xff] %vm228, 0.0
        %276 = vst.msk [vmem:[#allocation2 + $0x170] sm:$0xff] %vm228, 0.0
        %277 = vst.msk [vmem:[#allocation2 + $0x178] sm:$0x3] %vm231, 0.0
        %278 = vst.msk [vmem:[#allocation2 + $0x180] sm:$0xff] %vm228, 0.0
        %279 = vst.msk [vmem:[#allocation2 + $0x188] sm:$0xff] %vm228, 0.0
        %280 = vst.msk [vmem:[#allocation2 + $0x190] sm:$0x3] %vm231, 0.0
        %281 = vst.msk [vmem:[#allocation2 + $0x198] sm:$0xff] %vm228, 0.0
        %282 = vst.msk [vmem:[#allocation2 + $0x1a0] sm:$0xff] %vm228, 0.0
        %283 = vst.msk [vmem:[#allocation2 + $0x1a8] sm:$0x3] %vm231, 0.0
        %v284 = vld [vmem:[%s211] sm:$0xf]
        %v285 = vld [vmem:[%s211 + $0x4] sm:$0xf]
        %v286 = vld [vmem:[%s211 + $0x8] sm:$0xf]
        %v287 = vld [vmem:[%s211 + $0xc] sm:$0xf]
        %v288 = vld [vmem:[%s211 + $0x10] sm:$0xf]
        %v289 = vld [vmem:[%s211 + $0x14] sm:$0xf]
        %v290 = vld [vmem:[%s211 + $0x18] sm:$0xf]
        %v291 = vld [vmem:[%s211 + $0x1c] sm:$0xf]
        %v292 = vld [vmem:[%s211 + $0x20] sm:$0xf]
        %v293 = vld [vmem:[%s211 + $0x24] sm:$0xf]
        %v294 = vld [vmem:[%s211 + $0x28] sm:$0xf]
        %v295 = vld [vmem:[%s211 + $0x2c] sm:$0xf]
        %v296 = vld [vmem:[%s211 + $0x30] sm:$0xf]
        %v297 = vld [vmem:[%s211 + $0x34] sm:$0xf]
        %v298 = vld [vmem:[%s211 + $0x38] sm:$0xf]
        %v299 = vld [vmem:[%s211 + $0x3c] sm:$0xf]
        %v300 = vld [vmem:[%s211 + $0x40] sm:$0xf]
        %v301 = vld [vmem:[%s211 + $0x44] sm:$0xf]
        %v302 = vld [vmem:[%s211 + $0x48] sm:$0xf]
        %v303 = vld [vmem:[%s211 + $0x4c] sm:$0xf]
        %v304 = vld [vmem:[%s211 + $0x50] sm:$0xf]
        %v305 = vld [vmem:[%s211 + $0x54] sm:$0xf]
        %v306 = vld [vmem:[%s211 + $0x58] sm:$0xf]
        %v307 = vld [vmem:[%s211 + $0x5c] sm:$0xf]
        %v308 = vld [vmem:[%s211 + $0x60] sm:$0xf]
        %v309 = vld [vmem:[%s211 + $0x64] sm:$0xf]
        %v310 = vld [vmem:[%s211 + $0x68] sm:$0xf]
        %v311 = vld [vmem:[%s211 + $0x6c] sm:$0xf]
        %v312 = vld [vmem:[%s211 + $0x70] sm:$0xf]
        %v313 = vld [vmem:[%s211 + $0x74] sm:$0xf]
        %v314 = vld [vmem:[%s211 + $0x78] sm:$0xf]
        %v315 = vld [vmem:[%s211 + $0x7c] sm:$0xf]
        %v316 = vunpack.c.l.bf16 %v284
        %v317 = vunpack.c.l.bf16 %v285
        %v318 = vunpack.c.l.bf16 %v286
        %v319 = vunpack.c.l.bf16 %v287
        %v320 = vunpack.c.l.bf16 %v288
        %v321 = vunpack.c.l.bf16 %v289
        %v322 = vunpack.c.l.bf16 %v290
        %v323 = vunpack.c.l.bf16 %v291
        %v324 = vunpack.c.l.bf16 %v292
        %v325 = vunpack.c.l.bf16 %v293
        %v326 = vunpack.c.l.bf16 %v294
        %v327 = vunpack.c.l.bf16 %v295
        %v328 = vunpack.c.l.bf16 %v296
        %v329 = vunpack.c.l.bf16 %v297
        %v330 = vunpack.c.l.bf16 %v298
        %v331 = vunpack.c.l.bf16 %v299
        %v332 = vunpack.c.l.bf16 %v300
        %v333 = vunpack.c.l.bf16 %v301
        %v334 = vunpack.c.l.bf16 %v302
        %v335 = vunpack.c.l.bf16 %v303
        %v336 = vunpack.c.l.bf16 %v304
        %v337 = vunpack.c.l.bf16 %v305
        %v338 = vunpack.c.l.bf16 %v306
        %v339 = vunpack.c.l.bf16 %v307
        %v340 = vunpack.c.l.bf16 %v308
        %v341 = vunpack.c.l.bf16 %v309
        %v342 = vunpack.c.l.bf16 %v310
        %v343 = vunpack.c.l.bf16 %v311
        %v344 = vunpack.c.l.bf16 %v312
        %v345 = vunpack.c.l.bf16 %v313
        %v346 = vunpack.c.l.bf16 %v314
        %v347 = vunpack.c.l.bf16 %v315
        %s348 = scalar_lea.vmem [#allocation2], 24
        %349 = vst.msk [vmem:[%s348 + $0x1] sm:$0xff] %vm228, %v316
        %350 = vst.msk [vmem:[%s348 + $0x9] sm:$0xff] %vm228, %v317
        %351 = vst.msk [vmem:[%s348 + $0x19] sm:$0xff] %vm228, %v318
        %352 = vst.msk [vmem:[%s348 + $0x21] sm:$0xff] %vm228, %v319
        %353 = vst.msk [vmem:[%s348 + $0x31] sm:$0xff] %vm228, %v320
        %354 = vst.msk [vmem:[%s348 + $0x39] sm:$0xff] %vm228, %v321
        %355 = vst.msk [vmem:[%s348 + $0x49] sm:$0xff] %vm228, %v322
        %356 = vst.msk [vmem:[%s348 + $0x51] sm:$0xff] %vm228, %v323
        %357 = vst.msk [vmem:[%s348 + $0x61] sm:$0xff] %vm228, %v324
        %358 = vst.msk [vmem:[%s348 + $0x69] sm:$0xff] %vm228, %v325
        %359 = vst.msk [vmem:[%s348 + $0x79] sm:$0xff] %vm228, %v326
        %360 = vst.msk [vmem:[%s348 + $0x81] sm:$0xff] %vm228, %v327
        %361 = vst.msk [vmem:[%s348 + $0x91] sm:$0xff] %vm228, %v328
        %362 = vst.msk [vmem:[%s348 + $0x99] sm:$0xff] %vm228, %v329
        %363 = vst.msk [vmem:[%s348 + $0xa9] sm:$0xff] %vm228, %v330
        %364 = vst.msk [vmem:[%s348 + $0xb1] sm:$0xff] %vm228, %v331
        %365 = vst.msk [vmem:[%s348 + $0xc1] sm:$0xff] %vm228, %v332
        %366 = vst.msk [vmem:[%s348 + $0xc9] sm:$0xff] %vm228, %v333
        %367 = vst.msk [vmem:[%s348 + $0xd9] sm:$0xff] %vm228, %v334
        %368 = vst.msk [vmem:[%s348 + $0xe1] sm:$0xff] %vm228, %v335
        %369 = vst.msk [vmem:[%s348 + $0xf1] sm:$0xff] %vm228, %v336
        %370 = vst.msk [vmem:[%s348 + $0xf9] sm:$0xff] %vm228, %v337
        %371 = vst.msk [vmem:[%s348 + $0x109] sm:$0xff] %vm228, %v338
        %372 = vst.msk [vmem:[%s348 + $0x111] sm:$0xff] %vm228, %v339
        %373 = vst.msk [vmem:[%s348 + $0x121] sm:$0xff] %vm228, %v340
        %374 = vst.msk [vmem:[%s348 + $0x129] sm:$0xff] %vm228, %v341
        %375 = vst.msk [vmem:[%s348 + $0x139] sm:$0xff] %vm228, %v342
        %376 = vst.msk [vmem:[%s348 + $0x141] sm:$0xff] %vm228, %v343
        %377 = vst.msk [vmem:[%s348 + $0x151] sm:$0xff] %vm228, %v344
        %378 = vst.msk [vmem:[%s348 + $0x159] sm:$0xff] %vm228, %v345
        %379 = vst.msk [vmem:[%s348 + $0x169] sm:$0xff] %vm228, %v346
        %380 = vst.msk [vmem:[%s348 + $0x171] sm:$0xff] %vm228, %v347
      $region40: #{conv_bn_silu.1} parent=35 // pred_fallthru
        _
      %s381 = smul.u32 %s20, 8
      %s382 = smul.u32 %s381, 24
      %s383 = scalar_lea.vmem [#allocation2], %s382
      %v384 = vld [vmem:[%s383] sm:$0xff]
      %v385 = vld [vmem:[%s383 + $0x8] sm:$0xff]
      %v386 = vld [vmem:[%s383 + $0x10] sm:$0x3]
      %v387 = vld [vmem:[%s383 + $0x18] sm:$0xff]
      %v388 = vld [vmem:[%s383 + $0x20] sm:$0xff]
      %v389 = vld [vmem:[%s383 + $0x28] sm:$0x3]
      %v390 = vld [vmem:[%s383 + $0x30] sm:$0xff]
      %v391 = vld [vmem:[%s383 + $0x38] sm:$0xff]
      %v392 = vld [vmem:[%s383 + $0x40] sm:$0x3]
      %v393 = vld [vmem:[%s383 + $0x48] sm:$0xff]
      %v394 = vld [vmem:[%s383 + $0x50] sm:$0xff]
      %v395 = vld [vmem:[%s383 + $0x58] sm:$0x3]
      %v396 = vld [vmem:[%s383 + $0x60] sm:$0xff]
      %v397 = vld [vmem:[%s383 + $0x68] sm:$0xff]
      %v398 = vld [vmem:[%s383 + $0x70] sm:$0x3]
      %v399 = vld [vmem:[%s383 + $0x78] sm:$0xff]
      %v400 = vld [vmem:[%s383 + $0x80] sm:$0xff]
      %v401 = vld [vmem:[%s383 + $0x88] sm:$0x3]
      %v402 = vld [vmem:[%s383 + $0x90] sm:$0xff]
      %v403 = vld [vmem:[%s383 + $0x98] sm:$0xff]
      %v404 = vld [vmem:[%s383 + $0xa0] sm:$0x3]
      %v405 = vld [vmem:[%s383 + $0xa8] sm:$0xff]
      %v406 = vld [vmem:[%s383 + $0xb0] sm:$0xff]
      %v407 = vld [vmem:[%s383 + $0xb8] sm:$0x3]
      %v408 = vld [vmem:[%s383 + $0xc0] sm:$0xff]
      %v409 = vld [vmem:[%s383 + $0xc8] sm:$0xff]
      %v410 = vld [vmem:[%s383 + $0xd0] sm:$0x3]
      %v411 = vld [vmem:[%s383 + $0xd8] sm:$0xff]
      %v412 = vld [vmem:[%s383 + $0xe0] sm:$0xff]
      %v413 = vld [vmem:[%s383 + $0xe8] sm:$0x3]
      %vm438 = vcmask 1046528
      %v439 = vrot.slane %v384, 1
      %v440 = vrot.slane %v385, 1
      %v441 = vsel %vm438, %v439, %v440
      %v442 = vrot.slane %v386, 1
      %v443 = vsel %vm438, %v440, %v442
      %v444 = vrot.slane %v387, 1
      %v445 = vrot.slane %v388, 1
      %v446 = vsel %vm438, %v444, %v445
      %v447 = vrot.slane %v389, 1
      %v448 = vsel %vm438, %v445, %v447
      %v449 = vrot.slane %v390, 1
      %v450 = vrot.slane %v391, 1
      %v451 = vsel %vm438, %v449, %v450
      %v452 = vrot.slane %v392, 1
      %v453 = vsel %vm438, %v450, %v452
      %v454 = vrot.slane %v393, 1
      %v455 = vrot.slane %v394, 1
      %v456 = vsel %vm438, %v454, %v455
      %v457 = vrot.slane %v395, 1
      %v458 = vsel %vm438, %v455, %v457
      %v459 = vrot.slane %v396, 1
      %v460 = vrot.slane %v397, 1
      %v461 = vsel %vm438, %v459, %v460
      %v462 = vrot.slane %v398, 1
      %v463 = vsel %vm438, %v460, %v462
      %v464 = vrot.slane %v399, 1
      %v465 = vrot.slane %v400, 1
      %v466 = vsel %vm438, %v464, %v465
      %v467 = vrot.slane %v401, 1
      %v468 = vsel %vm438, %v465, %v467
      %v469 = vrot.slane %v402, 1
      %v470 = vrot.slane %v403, 1
      %v471 = vsel %vm438, %v469, %v470
      %v472 = vrot.slane %v404, 1
      %v473 = vsel %vm438, %v470, %v472
      %v474 = vrot.slane %v405, 1
      %v475 = vrot.slane %v406, 1
      %v476 = vsel %vm438, %v474, %v475
      %v477 = vrot.slane %v407, 1
      %v478 = vsel %vm438, %v475, %v477
      %479 = vrot.lane.b32.xlu0 %v441, 4
      %v480 = vpop.permute.xlu0 %479
      %481 = vrot.lane.b32.xlu0 %v443, 4
      %v482 = vpop.permute.xlu0 %481
      %483 = vrot.lane.b32.xlu0 %v446, 4
      %v484 = vpop.permute.xlu0 %483
      %485 = vrot.lane.b32.xlu0 %v448, 4
      %v486 = vpop.permute.xlu0 %485
      %487 = vrot.lane.b32.xlu0 %v451, 4
      %v488 = vpop.permute.xlu0 %487
      %489 = vrot.lane.b32.xlu0 %v453, 4
      %v490 = vpop.permute.xlu0 %489
      %491 = vrot.lane.b32.xlu0 %v456, 4
      %v492 = vpop.permute.xlu0 %491
      %493 = vrot.lane.b32.xlu0 %v458, 4
      %v494 = vpop.permute.xlu0 %493
      %495 = vrot.lane.b32.xlu0 %v461, 4
      %v496 = vpop.permute.xlu0 %495
      %497 = vrot.lane.b32.xlu0 %v463, 4
      %v498 = vpop.permute.xlu0 %497
      %499 = vrot.lane.b32.xlu0 %v466, 4
      %v500 = vpop.permute.xlu0 %499
      %501 = vrot.lane.b32.xlu0 %v468, 4
      %v502 = vpop.permute.xlu0 %501
      %503 = vrot.lane.b32.xlu0 %v471, 4
      %v504 = vpop.permute.xlu0 %503
      %505 = vrot.lane.b32.xlu0 %v473, 4
      %v506 = vpop.permute.xlu0 %505
      %507 = vrot.lane.b32.xlu0 %v476, 4
      %v508 = vpop.permute.xlu0 %507
      %509 = vrot.lane.b32.xlu0 %v478, 4
      %v510 = vpop.permute.xlu0 %509
      %vm527 = vcmask 1045504
      %v528 = vrot.slane %v384, 2
      %v529 = vrot.slane %v385, 2
      %v530 = vsel %vm527, %v528, %v529
      %v531 = vrot.slane %v386, 2
      %v532 = vsel %vm527, %v529, %v531
      %v533 = vrot.slane %v387, 2
      %v534 = vrot.slane %v388, 2
      %v535 = vsel %vm527, %v533, %v534
      %v536 = vrot.slane %v389, 2
      %v537 = vsel %vm527, %v534, %v536
      %v538 = vrot.slane %v390, 2
      %v539 = vrot.slane %v391, 2
      %v540 = vsel %vm527, %v538, %v539
      %v541 = vrot.slane %v392, 2
      %v542 = vsel %vm527, %v539, %v541
      %v543 = vrot.slane %v393, 2
      %v544 = vrot.slane %v394, 2
      %v545 = vsel %vm527, %v543, %v544
      %v546 = vrot.slane %v395, 2
      %v547 = vsel %vm527, %v544, %v546
      %v548 = vrot.slane %v396, 2
      %v549 = vrot.slane %v397, 2
      %v550 = vsel %vm527, %v548, %v549
      %v551 = vrot.slane %v398, 2
      %v552 = vsel %vm527, %v549, %v551
      %v553 = vrot.slane %v399, 2
      %v554 = vrot.slane %v400, 2
      %v555 = vsel %vm527, %v553, %v554
      %v556 = vrot.slane %v401, 2
      %v557 = vsel %vm527, %v554, %v556
      %v558 = vrot.slane %v402, 2
      %v559 = vrot.slane %v403, 2
      %v560 = vsel %vm527, %v558, %v559
      %v561 = vrot.slane %v404, 2
      %v562 = vsel %vm527, %v559, %v561
      %v563 = vrot.slane %v405, 2
      %v564 = vrot.slane %v406, 2
      %v565 = vsel %vm527, %v563, %v564
      %v566 = vrot.slane %v407, 2
      %v567 = vsel %vm527, %v564, %v566
      %568 = vrot.lane.b32.xlu0 %v530, 8
      %v569 = vpop.permute.xlu0 %568
      %570 = vrot.lane.b32.xlu0 %v532, 8
      %v571 = vpop.permute.xlu0 %570
      %572 = vrot.lane.b32.xlu0 %v535, 8
      %v573 = vpop.permute.xlu0 %572
      %574 = vrot.lane.b32.xlu0 %v537, 8
      %v575 = vpop.permute.xlu0 %574
      %576 = vrot.lane.b32.xlu0 %v540, 8
      %v577 = vpop.permute.xlu0 %576
      %578 = vrot.lane.b32.xlu0 %v542, 8
      %v579 = vpop.permute.xlu0 %578
      %580 = vrot.lane.b32.xlu0 %v545, 8
      %v581 = vpop.permute.xlu0 %580
      %582 = vrot.lane.b32.xlu0 %v547, 8
      %v583 = vpop.permute.xlu0 %582
      %584 = vrot.lane.b32.xlu0 %v550, 8
      %v585 = vpop.permute.xlu0 %584
      %586 = vrot.lane.b32.xlu0 %v552, 8
      %v587 = vpop.permute.xlu0 %586
      %588 = vrot.lane.b32.xlu0 %v555, 8
      %v589 = vpop.permute.xlu0 %588
      %590 = vrot.lane.b32.xlu0 %v557, 8
      %v591 = vpop.permute.xlu0 %590
      %592 = vrot.lane.b32.xlu0 %v560, 8
      %v593 = vpop.permute.xlu0 %592
      %594 = vrot.lane.b32.xlu0 %v562, 8
      %v595 = vpop.permute.xlu0 %594
      %596 = vrot.lane.b32.xlu0 %v565, 8
      %v597 = vpop.permute.xlu0 %596
      %598 = vrot.lane.b32.xlu0 %v567, 8
      %v599 = vpop.permute.xlu0 %598
      %618 = vrot.lane.b32.xlu0 %v387, 12
      %v619 = vpop.permute.xlu0 %618
      %620 = vrot.lane.b32.xlu0 %v388, 12
      %v621 = vpop.permute.xlu0 %620
      %622 = vrot.lane.b32.xlu0 %v390, 12
      %v623 = vpop.permute.xlu0 %622
      %624 = vrot.lane.b32.xlu0 %v391, 12
      %v625 = vpop.permute.xlu0 %624
      %626 = vrot.lane.b32.xlu0 %v393, 12
      %v627 = vpop.permute.xlu0 %626
      %628 = vrot.lane.b32.xlu0 %v394, 12
      %v629 = vpop.permute.xlu0 %628
      %630 = vrot.lane.b32.xlu0 %v396, 12
      %v631 = vpop.permute.xlu0 %630
      %632 = vrot.lane.b32.xlu0 %v397, 12
      %v633 = vpop.permute.xlu0 %632
      %634 = vrot.lane.b32.xlu0 %v399, 12
      %v635 = vpop.permute.xlu0 %634
      %636 = vrot.lane.b32.xlu0 %v400, 12
      %v637 = vpop.permute.xlu0 %636
      %638 = vrot.lane.b32.xlu0 %v402, 12
      %v639 = vpop.permute.xlu0 %638
      %640 = vrot.lane.b32.xlu0 %v403, 12
      %v641 = vpop.permute.xlu0 %640
      %642 = vrot.lane.b32.xlu0 %v405, 12
      %v643 = vpop.permute.xlu0 %642
      %644 = vrot.lane.b32.xlu0 %v406, 12
      %v645 = vpop.permute.xlu0 %644
      %646 = vrot.lane.b32.xlu0 %v408, 12
      %v647 = vpop.permute.xlu0 %646
      %648 = vrot.lane.b32.xlu0 %v409, 12
      %v649 = vpop.permute.xlu0 %648
      %v667 = vrot.slane %v408, 1
      %v668 = vrot.slane %v409, 1
      %v669 = vsel %vm438, %v667, %v668
      %v670 = vrot.slane %v410, 1
      %v671 = vsel %vm438, %v668, %v670
      %672 = vrot.lane.b32.xlu0 %v446, 16
      %v673 = vpop.permute.xlu0 %672
      %674 = vrot.lane.b32.xlu0 %v448, 16
      %v675 = vpop.permute.xlu0 %674
      %676 = vrot.lane.b32.xlu0 %v451, 16
      %v677 = vpop.permute.xlu0 %676
      %678 = vrot.lane.b32.xlu0 %v453, 16
      %v679 = vpop.permute.xlu0 %678
      %680 = vrot.lane.b32.xlu0 %v456, 16
      %v681 = vpop.permute.xlu0 %680
      %682 = vrot.lane.b32.xlu0 %v458, 16
      %v683 = vpop.permute.xlu0 %682
      %684 = vrot.lane.b32.xlu0 %v461, 16
      %v685 = vpop.permute.xlu0 %684
      %686 = vrot.lane.b32.xlu0 %v463, 16
      %v687 = vpop.permute.xlu0 %686
      %688 = vrot.lane.b32.xlu0 %v466, 16
      %v689 = vpop.permute.xlu0 %688
      %690 = vrot.lane.b32.xlu0 %v468, 16
      %v691 = vpop.permute.xlu0 %690
      %692 = vrot.lane.b32.xlu0 %v471, 16
      %v693 = vpop.permute.xlu0 %692
      %694 = vrot.lane.b32.xlu0 %v473, 16
      %v695 = vpop.permute.xlu0 %694
      %696 = vrot.lane.b32.xlu0 %v476, 16
      %v697 = vpop.permute.xlu0 %696
      %698 = vrot.lane.b32.xlu0 %v478, 16
      %v699 = vpop.permute.xlu0 %698
      %700 = vrot.lane.b32.xlu0 %v669, 16
      %v701 = vpop.permute.xlu0 %700
      %702 = vrot.lane.b32.xlu0 %v671, 16
      %v703 = vpop.permute.xlu0 %702
      %v720 = vrot.slane %v408, 2
      %v721 = vrot.slane %v409, 2
      %v722 = vsel %vm527, %v720, %v721
      %v723 = vrot.slane %v410, 2
      %v724 = vsel %vm527, %v721, %v723
      %725 = vrot.lane.b32.xlu0 %v535, 20
      %v726 = vpop.permute.xlu0 %725
      %727 = vrot.lane.b32.xlu0 %v537, 20
      %v728 = vpop.permute.xlu0 %727
      %729 = vrot.lane.b32.xlu0 %v540, 20
      %v730 = vpop.permute.xlu0 %729
      %731 = vrot.lane.b32.xlu0 %v542, 20
      %v732 = vpop.permute.xlu0 %731
      %733 = vrot.lane.b32.xlu0 %v545, 20
      %v734 = vpop.permute.xlu0 %733
      %735 = vrot.lane.b32.xlu0 %v547, 20
      %v736 = vpop.permute.xlu0 %735
      %737 = vrot.lane.b32.xlu0 %v550, 20
      %v738 = vpop.permute.xlu0 %737
      %739 = vrot.lane.b32.xlu0 %v552, 20
      %v740 = vpop.permute.xlu0 %739
      %741 = vrot.lane.b32.xlu0 %v555, 20
      %v742 = vpop.permute.xlu0 %741
      %743 = vrot.lane.b32.xlu0 %v557, 20
      %v744 = vpop.permute.xlu0 %743
      %745 = vrot.lane.b32.xlu0 %v560, 20
      %v746 = vpop.permute.xlu0 %745
      %747 = vrot.lane.b32.xlu0 %v562, 20
      %v748 = vpop.permute.xlu0 %747
      %749 = vrot.lane.b32.xlu0 %v565, 20
      %v750 = vpop.permute.xlu0 %749
      %751 = vrot.lane.b32.xlu0 %v567, 20
      %v752 = vpop.permute.xlu0 %751
      %753 = vrot.lane.b32.xlu0 %v722, 20
      %v754 = vpop.permute.xlu0 %753
      %755 = vrot.lane.b32.xlu0 %v724, 20
      %v756 = vpop.permute.xlu0 %755
      %775 = vrot.lane.b32.xlu0 %v390, 24
      %v776 = vpop.permute.xlu0 %775
      %777 = vrot.lane.b32.xlu0 %v391, 24
      %v778 = vpop.permute.xlu0 %777
      %779 = vrot.lane.b32.xlu0 %v393, 24
      %v780 = vpop.permute.xlu0 %779
      %781 = vrot.lane.b32.xlu0 %v394, 24
      %v782 = vpop.permute.xlu0 %781
      %783 = vrot.lane.b32.xlu0 %v396, 24
      %v784 = vpop.permute.xlu0 %783
      %785 = vrot.lane.b32.xlu0 %v397, 24
      %v786 = vpop.permute.xlu0 %785
      %787 = vrot.lane.b32.xlu0 %v399, 24
      %v788 = vpop.permute.xlu0 %787
      %789 = vrot.lane.b32.xlu0 %v400, 24
      %v790 = vpop.permute.xlu0 %789
      %791 = vrot.lane.b32.xlu0 %v402, 24
      %v792 = vpop.permute.xlu0 %791
      %793 = vrot.lane.b32.xlu0 %v403, 24
      %v794 = vpop.permute.xlu0 %793
      %795 = vrot.lane.b32.xlu0 %v405, 24
      %v796 = vpop.permute.xlu0 %795
      %797 = vrot.lane.b32.xlu0 %v406, 24
      %v798 = vpop.permute.xlu0 %797
      %799 = vrot.lane.b32.xlu0 %v408, 24
      %v800 = vpop.permute.xlu0 %799
      %801 = vrot.lane.b32.xlu0 %v409, 24
      %v802 = vpop.permute.xlu0 %801
      %803 = vrot.lane.b32.xlu0 %v411, 24
      %v804 = vpop.permute.xlu0 %803
      %805 = vrot.lane.b32.xlu0 %v412, 24
      %v806 = vpop.permute.xlu0 %805
      %v824 = vrot.slane %v411, 1
      %v825 = vrot.slane %v412, 1
      %v826 = vsel %vm438, %v824, %v825
      %v827 = vrot.slane %v413, 1
      %v828 = vsel %vm438, %v825, %v827
      %829 = vrot.lane.b32.xlu0 %v451, 28
      %v830 = vpop.permute.xlu0 %829
      %831 = vrot.lane.b32.xlu0 %v453, 28
      %v832 = vpop.permute.xlu0 %831
      %833 = vrot.lane.b32.xlu0 %v456, 28
      %v834 = vpop.permute.xlu0 %833
      %835 = vrot.lane.b32.xlu0 %v458, 28
      %v836 = vpop.permute.xlu0 %835
      %837 = vrot.lane.b32.xlu0 %v461, 28
      %v838 = vpop.permute.xlu0 %837
      %839 = vrot.lane.b32.xlu0 %v463, 28
      %v840 = vpop.permute.xlu0 %839
      %841 = vrot.lane.b32.xlu0 %v466, 28
      %v842 = vpop.permute.xlu0 %841
      %843 = vrot.lane.b32.xlu0 %v468, 28
      %v844 = vpop.permute.xlu0 %843
      %845 = vrot.lane.b32.xlu0 %v471, 28
      %v846 = vpop.permute.xlu0 %845
      %847 = vrot.lane.b32.xlu0 %v473, 28
      %v848 = vpop.permute.xlu0 %847
      %849 = vrot.lane.b32.xlu0 %v476, 28
      %v850 = vpop.permute.xlu0 %849
      %851 = vrot.lane.b32.xlu0 %v478, 28
      %v852 = vpop.permute.xlu0 %851
      %853 = vrot.lane.b32.xlu0 %v669, 28
      %v854 = vpop.permute.xlu0 %853
      %855 = vrot.lane.b32.xlu0 %v671, 28
      %v856 = vpop.permute.xlu0 %855
      %857 = vrot.lane.b32.xlu0 %v826, 28
      %v858 = vpop.permute.xlu0 %857
      %859 = vrot.lane.b32.xlu0 %v828, 28
      %v860 = vpop.permute.xlu0 %859
      %v877 = vrot.slane %v411, 2
      %v878 = vrot.slane %v412, 2
      %v879 = vsel %vm527, %v877, %v878
      %v880 = vrot.slane %v413, 2
      %v881 = vsel %vm527, %v878, %v880
      %882 = vrot.lane.b32.xlu0 %v540, 32
      %v883 = vpop.permute.xlu0 %882
      %884 = vrot.lane.b32.xlu0 %v542, 32
      %v885 = vpop.permute.xlu0 %884
      %886 = vrot.lane.b32.xlu0 %v545, 32
      %v887 = vpop.permute.xlu0 %886
      %888 = vrot.lane.b32.xlu0 %v547, 32
      %v889 = vpop.permute.xlu0 %888
      %890 = vrot.lane.b32.xlu0 %v550, 32
      %v891 = vpop.permute.xlu0 %890
      %892 = vrot.lane.b32.xlu0 %v552, 32
      %v893 = vpop.permute.xlu0 %892
      %894 = vrot.lane.b32.xlu0 %v555, 32
      %v895 = vpop.permute.xlu0 %894
      %896 = vrot.lane.b32.xlu0 %v557, 32
      %v897 = vpop.permute.xlu0 %896
      %898 = vrot.lane.b32.xlu0 %v560, 32
      %v899 = vpop.permute.xlu0 %898
      %900 = vrot.lane.b32.xlu0 %v562, 32
      %v901 = vpop.permute.xlu0 %900
      %902 = vrot.lane.b32.xlu0 %v565, 32
      %v903 = vpop.permute.xlu0 %902
      %904 = vrot.lane.b32.xlu0 %v567, 32
      %v905 = vpop.permute.xlu0 %904
      %906 = vrot.lane.b32.xlu0 %v722, 32
      %v907 = vpop.permute.xlu0 %906
      %908 = vrot.lane.b32.xlu0 %v724, 32
      %v909 = vpop.permute.xlu0 %908
      %910 = vrot.lane.b32.xlu0 %v879, 32
      %v911 = vpop.permute.xlu0 %910
      %912 = vrot.lane.b32.xlu0 %v881, 32
      %v913 = vpop.permute.xlu0 %912
      %vm930 = vcmask 31744
      %v931 = vsel %vm930, %v384, %v480
      %v932 = vsel %vm930, %v385, %v482
      %v933 = vsel %vm930, %v387, %v484
      %v934 = vsel %vm930, %v388, %v486
      %v935 = vsel %vm930, %v390, %v488
      %v936 = vsel %vm930, %v391, %v490
      %v937 = vsel %vm930, %v393, %v492
      %v938 = vsel %vm930, %v394, %v494
      %v939 = vsel %vm930, %v396, %v496
      %v940 = vsel %vm930, %v397, %v498
      %v941 = vsel %vm930, %v399, %v500
      %v942 = vsel %vm930, %v400, %v502
      %v943 = vsel %vm930, %v402, %v504
      %v944 = vsel %vm930, %v403, %v506
      %v945 = vsel %vm930, %v405, %v508
      %v946 = vsel %vm930, %v406, %v510
      %vm947 = vcmask 64512
      %v948 = vsel %vm947, %v931, %v569
      %v949 = vsel %vm947, %v932, %v571
      %v950 = vsel %vm947, %v933, %v573
      %v951 = vsel %vm947, %v934, %v575
      %v952 = vsel %vm947, %v935, %v577
      %v953 = vsel %vm947, %v936, %v579
      %v954 = vsel %vm947, %v937, %v581
      %v955 = vsel %vm947, %v938, %v583
      %v956 = vsel %vm947, %v939, %v585
      %v957 = vsel %vm947, %v940, %v587
      %v958 = vsel %vm947, %v941, %v589
      %v959 = vsel %vm947, %v942, %v591
      %v960 = vsel %vm947, %v943, %v593
      %v961 = vsel %vm947, %v944, %v595
      %v962 = vsel %vm947, %v945, %v597
      %v963 = vsel %vm947, %v946, %v599
      %vm964 = vcmask 97280
      %v965 = vsel %vm964, %v948, %v619
      %v966 = vsel %vm964, %v949, %v621
      %v967 = vsel %vm964, %v950, %v623
      %v968 = vsel %vm964, %v951, %v625
      %v969 = vsel %vm964, %v952, %v627
      %v970 = vsel %vm964, %v953, %v629
      %v971 = vsel %vm964, %v954, %v631
      %v972 = vsel %vm964, %v955, %v633
      %v973 = vsel %vm964, %v956, %v635
      %v974 = vsel %vm964, %v957, %v637
      %v975 = vsel %vm964, %v958, %v639
      %v976 = vsel %vm964, %v959, %v641
      %v977 = vsel %vm964, %v960, %v643
      %v978 = vsel %vm964, %v961, %v645
      %v979 = vsel %vm964, %v962, %v647
      %v980 = vsel %vm964, %v963, %v649
      %vm981 = vcmask 130048
      %v982 = vsel %vm981, %v965, %v673
      %v983 = vsel %vm981, %v966, %v675
      %v984 = vsel %vm981, %v967, %v677
      %v985 = vsel %vm981, %v968, %v679
      %v986 = vsel %vm981, %v969, %v681
      %v987 = vsel %vm981, %v970, %v683
      %v988 = vsel %vm981, %v971, %v685
      %v989 = vsel %vm981, %v972, %v687
      %v990 = vsel %vm981, %v973, %v689
      %v991 = vsel %vm981, %v974, %v691
      %v992 = vsel %vm981, %v975, %v693
      %v993 = vsel %vm981, %v976, %v695
      %v994 = vsel %vm981, %v977, %v697
      %v995 = vsel %vm981, %v978, %v699
      %v996 = vsel %vm981, %v979, %v701
      %v997 = vsel %vm981, %v980, %v703
      %vm998 = vcmask 162816
      %v999 = vsel %vm998, %v982, %v726
      %v1000 = vsel %vm998, %v983, %v728
      %v1001 = vsel %vm998, %v984, %v730
      %v1002 = vsel %vm998, %v985, %v732
      %v1003 = vsel %vm998, %v986, %v734
      %v1004 = vsel %vm998, %v987, %v736
      %v1005 = vsel %vm998, %v988, %v738
      %v1006 = vsel %vm998, %v989, %v740
      %v1007 = vsel %vm998, %v990, %v742
      %v1008 = vsel %vm998, %v991, %v744
      %v1009 = vsel %vm998, %v992, %v746
      %v1010 = vsel %vm998, %v993, %v748
      %v1011 = vsel %vm998, %v994, %v750
      %v1012 = vsel %vm998, %v995, %v752
      %v1013 = vsel %vm998, %v996, %v754
      %v1014 = vsel %vm998, %v997, %v756
      %vm1015 = vcmask 195584
      %v1016 = vsel %vm1015, %v999, %v776
      %v1017 = vsel %vm1015, %v1000, %v778
      %v1018 = vsel %vm1015, %v1001, %v780
      %v1019 = vsel %vm1015, %v1002, %v782
      %v1020 = vsel %vm1015, %v1003, %v784
      %v1021 = vsel %vm1015, %v1004, %v786
      %v1022 = vsel %vm1015, %v1005, %v788
      %v1023 = vsel %vm1015, %v1006, %v790
      %v1024 = vsel %vm1015, %v1007, %v792
      %v1025 = vsel %vm1015, %v1008, %v794
      %v1026 = vsel %vm1015, %v1009, %v796
      %v1027 = vsel %vm1015, %v1010, %v798
      %v1028 = vsel %vm1015, %v1011, %v800
      %v1029 = vsel %vm1015, %v1012, %v802
      %v1030 = vsel %vm1015, %v1013, %v804
      %v1031 = vsel %vm1015, %v1014, %v806
      %vm1032 = vcmask 228352
      %v1033 = vsel %vm1032, %v1016, %v830
      %v1034 = vsel %vm1032, %v1017, %v832
      %v1035 = vsel %vm1032, %v1018, %v834
      %v1036 = vsel %vm1032, %v1019, %v836
      %v1037 = vsel %vm1032, %v1020, %v838
      %v1038 = vsel %vm1032, %v1021, %v840
      %v1039 = vsel %vm1032, %v1022, %v842
      %v1040 = vsel %vm1032, %v1023, %v844
      %v1041 = vsel %vm1032, %v1024, %v846
      %v1042 = vsel %vm1032, %v1025, %v848
      %v1043 = vsel %vm1032, %v1026, %v850
      %v1044 = vsel %vm1032, %v1027, %v852
      %v1045 = vsel %vm1032, %v1028, %v854
      %v1046 = vsel %vm1032, %v1029, %v856
      %v1047 = vsel %vm1032, %v1030, %v858
      %v1048 = vsel %vm1032, %v1031, %v860
      %vm1049 = vcmask 261120
      %v1050 = vsel %vm1049, %v1033, %v883
      %v1051 = vsel %vm1049, %v1034, %v885
      %v1052 = vsel %vm1049, %v1035, %v887
      %v1053 = vsel %vm1049, %v1036, %v889
      %v1054 = vsel %vm1049, %v1037, %v891
      %v1055 = vsel %vm1049, %v1038, %v893
      %v1056 = vsel %vm1049, %v1039, %v895
      %v1057 = vsel %vm1049, %v1040, %v897
      %v1058 = vsel %vm1049, %v1041, %v899
      %v1059 = vsel %vm1049, %v1042, %v901
      %v1060 = vsel %vm1049, %v1043, %v903
      %v1061 = vsel %vm1049, %v1044, %v905
      %v1062 = vsel %vm1049, %v1045, %v907
      %v1063 = vsel %vm1049, %v1046, %v909
      %v1064 = vsel %vm1049, %v1047, %v911
      %v1065 = vsel %vm1049, %v1048, %v913
      %v1066 = vpack.c.bf16 %v1051, %v1050
      %v1067 = vpack.c.bf16 %v1053, %v1052
      %v1068 = vpack.c.bf16 %v1055, %v1054
      %v1069 = vpack.c.bf16 %v1057, %v1056
      %v1070 = vpack.c.bf16 %v1059, %v1058
      %v1071 = vpack.c.bf16 %v1061, %v1060
      %v1072 = vpack.c.bf16 %v1063, %v1062
      %v1073 = vpack.c.bf16 %v1065, %v1064
      %v1074 = vld [vmem:[%s1] sm:$0xf]
      %v1075 = vld [vmem:[%s1 + $0x4] sm:$0xf]
      %v1076 = vld [vmem:[%s1 + $0x8] sm:$0xf]
      %v1077 = vld [vmem:[%s1 + $0xc] sm:$0xf]
      %v1078 = vld [vmem:[%s1 + $0x10] sm:$0x3]
      %v1084 = vunpack.c.l.b16 %v1074
      %v1085 = vunpack.c.l.b16 %v1075
      %v1086 = vunpack.c.l.b16 %v1076
      %v1087 = vunpack.c.l.b16 %v1077
      %v1088 = vunpack.c.l.b16 %v1078
      %v1089 = vpack.c.b16 %v1085, %v1084
      %v1090 = vpack.c.b16 %v1087, %v1086
      %v1091 = vpack.c.b16 %v1088, %v1088
      %vm1094 = vcmask 293888
      %v1096 = vsel %vm1094, %v1066, 0
      %v1099 = vsel %vm1094, %v1067, 0
      %v1102 = vsel %vm1094, %v1068, 0
      %v1105 = vsel %vm1094, %v1069, 0
      %v1108 = vsel %vm1094, %v1070, 0
      %v1111 = vsel %vm1094, %v1071, 0
      %v1114 = vsel %vm1094, %v1072, 0
      %v1117 = vsel %vm1094, %v1073, 0
      %vm1119 = vcmask 1041408
      %v1121 = vsel %vm1119, %v1091, 0
      %1123 = vmatprep.subr.bf16.mxu0 0
      %1124 = vmatpush1.bf16.msra.mxu0 %v1089
      %1125 = vmatprep.subr.bf16.mxu0 0
      %1126 = vmatpush1.bf16.msra.mxu0 %v1090
      %1127 = vmatprep.subr.bf16.mxu0 0
      %1128 = vmatpush1.bf16.msra.mxu0 %v1121
      %1129 = vmatprep.subr.bf16.mxu0 0
      %1130 = vmatpush1.bf16.msra.mxu0 0
      %1131 = vmatprep.subr.bf16.mxu0 0
      %1132 = vmatpush1.bf16.msra.mxu0 0
      %1133 = vmatprep.subr.bf16.mxu0 0
      %1134 = vmatpush1.bf16.msra.mxu0 0
      %1135 = vmatprep.subr.bf16.mxu0 0
      %1136 = vmatpush1.bf16.msra.mxu0 0
      %1137 = vmatprep.subr.bf16.mxu0 0
      %1138 = vmatpush1.bf16.msra.mxu0 0
      %1139 = vmatprep.subr.bf16.mxu0 0
      %1140 = vmatpush1.bf16.msra.mxu0 0
      %1141 = vmatprep.subr.bf16.mxu0 0
      %1142 = vmatpush1.bf16.msra.mxu0 0
      %1143 = vmatprep.subr.bf16.mxu0 0
      %1144 = vmatpush1.bf16.msra.mxu0 0
      %1145 = vmatprep.subr.bf16.mxu0 0
      %1146 = vmatpush1.bf16.msra.mxu0 0
      %1147 = vmatprep.subr.bf16.mxu0 0
      %1148 = vmatpush1.bf16.msra.mxu0 0
      %1149 = vmatprep.subr.bf16.mxu0 0
      %1150 = vmatpush1.bf16.msra.mxu0 0
      %1151 = vmatprep.subr.bf16.mxu0 0
      %1152 = vmatpush1.bf16.msra.mxu0 0
      %1153 = vmatprep.subr.bf16.mxu0 0
      %1154 = vmatpush1.bf16.msra.mxu0 0
      %1155 = vmatprep.mubr.bf16.mxu0 0
      %1156 = vmatmul.mubr.bf16.gmra.mrb[0].mxu0 %v1096
      %v1157 = vpop.f32.mrb[0].mxu0
      %v1158 = vadd.f32 0.0, %v1157
      %v1159 = vpop.f32.mrb[0].mxu0
      %v1160 = vpop.f32.mrb[0].mxu0
      %v1161 = vadd.f32 0.0, %v1160
      %v1162 = vpop.f32.mrb[0].mxu0
      %1163 = vmatprep.mubr.bf16.mxu0 0
      %1164 = vmatmul.mubr.bf16.gmra.mrb[0].mxu0 %v1099
      %v1165 = vpop.f32.mrb[0].mxu0
      %v1166 = vadd.f32 0.0, %v1165
      %v1167 = vpop.f32.mrb[0].mxu0
      %v1168 = vpop.f32.mrb[0].mxu0
      %v1169 = vadd.f32 0.0, %v1168
      %v1170 = vpop.f32.mrb[0].mxu0
      %1171 = vmatprep.mubr.bf16.mxu0 0
      %1172 = vmatmul.mubr.bf16.gmra.mrb[0].mxu0 %v1102
      %v1173 = vpop.f32.mrb[0].mxu0
      %v1174 = vadd.f32 0.0, %v1173
      %v1175 = vpop.f32.mrb[0].mxu0
      %v1176 = vpop.f32.mrb[0].mxu0
      %v1177 = vadd.f32 0.0, %v1176
      %v1178 = vpop.f32.mrb[0].mxu0
      %1179 = vmatprep.mubr.bf16.mxu0 0
      %1180 = vmatmul.mubr.bf16.gmra.mrb[0].mxu0 %v1105
      %v1181 = vpop.f32.mrb[0].mxu0
      %v1182 = vadd.f32 0.0, %v1181
      %v1183 = vpop.f32.mrb[0].mxu0
      %v1184 = vpop.f32.mrb[0].mxu0
      %v1185 = vadd.f32 0.0, %v1184
      %v1186 = vpop.f32.mrb[0].mxu0
      %1187 = vmatprep.mubr.bf16.mxu0 0
      %1188 = vmatmul.mubr.bf16.gmra.mrb[0].mxu0 %v1108
      %v1189 = vpop.f32.mrb[0].mxu0
      %v1190 = vadd.f32 0.0, %v1189
      %v1191 = vpop.f32.mrb[0].mxu0
      %v1192 = vpop.f32.mrb[0].mxu0
      %v1193 = vadd.f32 0.0, %v1192
      %v1194 = vpop.f32.mrb[0].mxu0
      %1195 = vmatprep.mubr.bf16.mxu0 0
      %1196 = vmatmul.mubr.bf16.gmra.mrb[0].mxu0 %v1111
      %v1197 = vpop.f32.mrb[0].mxu0
      %v1198 = vadd.f32 0.0, %v1197
      %v1199 = vpop.f32.mrb[0].mxu0
      %v1200 = vpop.f32.mrb[0].mxu0
      %v1201 = vadd.f32 0.0, %v1200
      %v1202 = vpop.f32.mrb[0].mxu0
      %1203 = vmatprep.mubr.bf16.mxu0 0
      %1204 = vmatmul.mubr.bf16.gmra.mrb[0].mxu0 %v1114
      %v1205 = vpop.f32.mrb[0].mxu0
      %v1206 = vadd.f32 0.0, %v1205
      %v1207 = vpop.f32.mrb[0].mxu0
      %v1208 = vpop.f32.mrb[0].mxu0
      %v1209 = vadd.f32 0.0, %v1208
      %v1210 = vpop.f32.mrb[0].mxu0
      %1211 = vmatprep.mubr.bf16.mxu0 0
      %1212 = vmatmul.mubr.bf16.gmra.mrb[0].mxu0 %v1117
      %v1213 = vpop.f32.mrb[0].mxu0
      %v1214 = vadd.f32 0.0, %v1213
      %v1215 = vpop.f32.mrb[0].mxu0
      %v1216 = vpop.f32.mrb[0].mxu0
      %v1217 = vadd.f32 0.0, %v1216
      %v1218 = vpop.f32.mrb[0].mxu0
      %1219 = vdwg.mxu0
      %v1220 = vld [vmem:[%s2] sm:$0x1]
      %v1222 = vlaneseq
      %v1223 = vshrl.u32 %v1222, 7
      %v1224 = vsub.s32 0, %v1223
      %v1225 = vrot.slane %v1220, %v1224
      %v1227 = vmul.f32 %v1158, %v1225
      %v1228 = vmul.f32 %v1161, %v1225
      %v1229 = vmul.f32 %v1166, %v1225
      %v1230 = vmul.f32 %v1169, %v1225
      %v1231 = vmul.f32 %v1174, %v1225
      %v1232 = vmul.f32 %v1177, %v1225
      %v1233 = vmul.f32 %v1182, %v1225
      %v1234 = vmul.f32 %v1185, %v1225
      %v1235 = vmul.f32 %v1190, %v1225
      %v1236 = vmul.f32 %v1193, %v1225
      %v1237 = vmul.f32 %v1198, %v1225
      %v1238 = vmul.f32 %v1201, %v1225
      %v1239 = vmul.f32 %v1206, %v1225
      %v1240 = vmul.f32 %v1209, %v1225
      %v1241 = vmul.f32 %v1214, %v1225
      %v1242 = vmul.f32 %v1217, %v1225
      %v1243 = vld [vmem:[%s3] sm:$0x1]
      %v1245 = vlaneseq
      %v1246 = vshrl.u32 %v1245, 7
      %v1247 = vsub.s32 0, %v1246
      %v1248 = vrot.slane %v1243, %v1247
      %v1250 = vadd.f32 %v1227, %v1248
      %v1251 = vadd.f32 %v1228, %v1248
      %v1252 = vadd.f32 %v1229, %v1248
      %v1253 = vadd.f32 %v1230, %v1248
      %v1254 = vadd.f32 %v1231, %v1248
      %v1255 = vadd.f32 %v1232, %v1248
      %v1256 = vadd.f32 %v1233, %v1248
      %v1257 = vadd.f32 %v1234, %v1248
      %v1258 = vadd.f32 %v1235, %v1248
      %v1259 = vadd.f32 %v1236, %v1248
      %v1260 = vadd.f32 %v1237, %v1248
      %v1261 = vadd.f32 %v1238, %v1248
      %v1262 = vadd.f32 %v1239, %v1248
      %v1263 = vadd.f32 %v1240, %v1248
      %v1264 = vadd.f32 %v1241, %v1248
      %v1265 = vadd.f32 %v1242, %v1248
      %v1266 = vsub.f32 0.0, %v1250
      %v1267 = vsub.f32 0.0, %v1251
      %v1268 = vsub.f32 0.0, %v1252
      %v1269 = vsub.f32 0.0, %v1253
      %v1270 = vsub.f32 0.0, %v1254
      %v1271 = vsub.f32 0.0, %v1255
      %v1272 = vsub.f32 0.0, %v1256
      %v1273 = vsub.f32 0.0, %v1257
      %v1274 = vsub.f32 0.0, %v1258
      %v1275 = vsub.f32 0.0, %v1259
      %v1276 = vsub.f32 0.0, %v1260
      %v1277 = vsub.f32 0.0, %v1261
      %v1278 = vsub.f32 0.0, %v1262
      %v1279 = vsub.f32 0.0, %v1263
      %v1280 = vsub.f32 0.0, %v1264
      %v1281 = vsub.f32 0.0, %v1265
      %v1282 = vmul.f32 %v1266, 1.442695
      %v1283 = vpow.pop %v1282
      %v1284 = vmul.f32 %v1267, 1.442695
      %v1285 = vpow.pop %v1284
      %v1286 = vmul.f32 %v1268, 1.442695
      %v1287 = vpow.pop %v1286
      %v1288 = vmul.f32 %v1269, 1.442695
      %v1289 = vpow.pop %v1288
      %v1290 = vmul.f32 %v1270, 1.442695
      %v1291 = vpow.pop %v1290
      %v1292 = vmul.f32 %v1271, 1.442695
      %v1293 = vpow.pop %v1292
      %v1294 = vmul.f32 %v1272, 1.442695
      %v1295 = vpow.pop %v1294
      %v1296 = vmul.f32 %v1273, 1.442695
      %v1297 = vpow.pop %v1296
      %v1298 = vmul.f32 %v1274, 1.442695
      %v1299 = vpow.pop %v1298
      %v1300 = vmul.f32 %v1275, 1.442695
      %v1301 = vpow.pop %v1300
      %v1302 = vmul.f32 %v1276, 1.442695
      %v1303 = vpow.pop %v1302
      %v1304 = vmul.f32 %v1277, 1.442695
      %v1305 = vpow.pop %v1304
      %v1306 = vmul.f32 %v1278, 1.442695
      %v1307 = vpow.pop %v1306
      %v1308 = vmul.f32 %v1279, 1.442695
      %v1309 = vpow.pop %v1308
      %v1310 = vmul.f32 %v1280, 1.442695
      %v1311 = vpow.pop %v1310
      %v1312 = vmul.f32 %v1281, 1.442695
      %v1313 = vpow.pop %v1312
      %v1314 = vadd.f32 %v1283, 1.0
      %v1315 = vadd.f32 %v1285, 1.0
      %v1316 = vadd.f32 %v1287, 1.0
      %v1317 = vadd.f32 %v1289, 1.0
      %v1318 = vadd.f32 %v1291, 1.0
      %v1319 = vadd.f32 %v1293, 1.0
      %v1320 = vadd.f32 %v1295, 1.0
      %v1321 = vadd.f32 %v1297, 1.0
      %v1322 = vadd.f32 %v1299, 1.0
      %v1323 = vadd.f32 %v1301, 1.0
      %v1324 = vadd.f32 %v1303, 1.0
      %v1325 = vadd.f32 %v1305, 1.0
      %v1326 = vadd.f32 %v1307, 1.0
      %v1327 = vadd.f32 %v1309, 1.0
      %v1328 = vadd.f32 %v1311, 1.0
      %v1329 = vadd.f32 %v1313, 1.0
      %v1330 = vrcp.pop %v1314
      %v1331 = vrcp.pop %v1315
      %v1332 = vrcp.pop %v1316
      %v1333 = vrcp.pop %v1317
      %v1334 = vrcp.pop %v1318
      %v1335 = vrcp.pop %v1319
      %v1336 = vrcp.pop %v1320
      %v1337 = vrcp.pop %v1321
      %v1338 = vrcp.pop %v1322
      %v1339 = vrcp.pop %v1323
      %v1340 = vrcp.pop %v1324
      %v1341 = vrcp.pop %v1325
      %v1342 = vrcp.pop %v1326
      %v1343 = vrcp.pop %v1327
      %v1344 = vrcp.pop %v1328
      %v1345 = vrcp.pop %v1329
      %v1346 = vmul.f32 %v1250, %v1330
      %v1347 = vmul.f32 %v1251, %v1331
      %v1348 = vmul.f32 %v1252, %v1332
      %v1349 = vmul.f32 %v1253, %v1333
      %v1350 = vmul.f32 %v1254, %v1334
      %v1351 = vmul.f32 %v1255, %v1335
      %v1352 = vmul.f32 %v1256, %v1336
      %v1353 = vmul.f32 %v1257, %v1337
      %v1354 = vmul.f32 %v1258, %v1338
      %v1355 = vmul.f32 %v1259, %v1339
      %v1356 = vmul.f32 %v1260, %v1340
      %v1357 = vmul.f32 %v1261, %v1341
      %v1358 = vmul.f32 %v1262, %v1342
      %v1359 = vmul.f32 %v1263, %v1343
      %v1360 = vmul.f32 %v1264, %v1344
      %v1361 = vmul.f32 %v1265, %v1345
      %1362 = vst.msk [vmem:[%s221] sm:$0xff] %vm947, %v1346
      %1363 = vst.msk [vmem:[%s221 + $0x8] sm:$0xff] %vm947, %v1347
      %1364 = vst.msk [vmem:[%s221 + $0x10] sm:$0xff] %vm947, %v1348
      %1365 = vst.msk [vmem:[%s221 + $0x18] sm:$0xff] %vm947, %v1349
      %1366 = vst.msk [vmem:[%s221 + $0x20] sm:$0xff] %vm947, %v1350
      %1367 = vst.msk [vmem:[%s221 + $0x28] sm:$0xff] %vm947, %v1351
      %1368 = vst.msk [vmem:[%s221 + $0x30] sm:$0xff] %vm947, %v1352
      %1369 = vst.msk [vmem:[%s221 + $0x38] sm:$0xff] %vm947, %v1353
      %1370 = vst.msk [vmem:[%s221 + $0x40] sm:$0xff] %vm947, %v1354
      %1371 = vst.msk [vmem:[%s221 + $0x48] sm:$0xff] %vm947, %v1355
      %1372 = vst.msk [vmem:[%s221 + $0x50] sm:$0xff] %vm947, %v1356
      %1373 = vst.msk [vmem:[%s221 + $0x58] sm:$0xff] %vm947, %v1357
      %1374 = vst.msk [vmem:[%s221 + $0x60] sm:$0xff] %vm947, %v1358
      %1375 = vst.msk [vmem:[%s221 + $0x68] sm:$0xff] %vm947, %v1359
      %1376 = vst.msk [vmem:[%s221 + $0x70] sm:$0xff] %vm947, %v1360
      %1377 = vst.msk [vmem:[%s221 + $0x78] sm:$0xff] %vm947, %v1361
      %s1378 = smul.u32 8, %s20
      %p1379 = scmp.lt.s32.totalorder %s19, 1
      %s1380 = scalar_select %p1379, %s19, 1
      %p1381 = scmp.lt.s32.totalorder %s1378, 15
      %s1382 = scalar_select %p1381, %s1378, 15
      %s1383 = smul.addr %s1382, 2
      %s1384 = smul.addr %s1380, 32
      %s1385 = sadd.s32 %s1383, %s1384
      %s1386 = smul.addr %s1385, 8
      %s1387 = scalar_lea.vmem %s4, %s1386
      // Predicated region
      $region41: #{conv_bn_silu.1} parent=35 // pred_check
        %p1388 = pneg %p136
      $region42: #{conv_bn_silu.1} parent=35 // pred_check_branch
        %1390 = sbr.rel (%p1388) target = $region44
      $region43: #{conv_bn_silu.1} parent=35 // pred_region
        %s1391 = smul.u32 8, %s20
      $region44: #{conv_bn_silu.1} parent=35 // pred_fallthru
        _
    $region36: #{conv_bn_silu.1} parent=5 // pred_fallthru
      _
    %p1392 = scmp.le.s32.totalorder 2, %s10
    // Predicated region
    $region45: #{conv_bn_silu.1} parent=5 // pred_check
      %p1393 = pneg %p1392
    $region46: #{conv_bn_silu.1} parent=5 // pred_check_branch
      %1395 = sbr.rel (%p1393) target = $region48
    $region47: #{conv_bn_silu.1} parent=5 // pred_region
      %s1396 = ssub.s32 %s10, 2
      // Predicated region
      $region49: #{conv_bn_silu.1} parent=47 // pred_check
        %p1397 = pneg %p142
      $region50: #{conv_bn_silu.1} parent=47 // pred_check_branch
        %1399 = sbr.rel (%p1397) target = $region52
      $region51: #{conv_bn_silu.1} parent=47 // pred_region
        %s1400 = smul.u32 8, %s22
        %p1401 = scmp.lt.s32.totalorder %s21, 1
        %s1402 = scalar_select %p1401, %s21, 1
        %p1403 = scmp.lt.s32.totalorder %s1400, 15
        %s1404 = scalar_select %p1403, %s1400, 15
        %s1405 = smul.addr %s1404, 2
        %s1406 = smul.addr %s1402, 32
        %s1407 = sadd.s32 %s1405, %s1406
        %s1408 = smul.addr %s1407, 8
        %s1409 = scalar_lea.vmem %s4, %s1408
      $region52: #{conv_bn_silu.1} parent=47 // pred_fallthru
        _
    $region48: #{conv_bn_silu.1} parent=5 // pred_fallthru
      _
  $region6: #{conv_bn_silu.1} parent=0 // loop_footer
    %s14 = sadd.s32 1, %s10
  $region7: #{conv_bn_silu.1} parent=0 // loop_footer_branch
    %9 = sbr.rel target = $region3
  $region8: #{conv_bn_silu.1} parent=0 // loop_exit
    _

</llo_original>
